<compile_context>
chip_gen: v7x
topology: tpu7x:2x2x1
jax: 0.10.0
libtpu: 0.0.40
codegen_flags: <defaults>
</compile_context>

<pallas_src>
import functools
import math

import jax
import jax.numpy as jnp
from jax.experimental import pallas as pl
from jax.experimental.pallas import tpu as pltpu


def _round_up(n, m):
    return ((n + m - 1) // m) * m


def dueling_kernel(x_ref, w1_ref, b1_ref,
                   wa1_ref, ba1_ref, wa2_ref, ba2_ref,
                   wv1_ref, bv1_ref, wv2_ref, bv2_ref,
                   q_ref, *, n_actions):
    # Feature layer: (tb, S) @ (S, 256) -> ReLU  (weights already transposed).
    feat = jnp.dot(x_ref[...], w1_ref[...], preferred_element_type=jnp.float32)
    feat = jnp.maximum(feat + b1_ref[...], 0.0)

    # Advantage head hidden: (tb, 256) @ (256, 128) -> ReLU.
    adv_h = jnp.dot(feat, wa1_ref[...], preferred_element_type=jnp.float32)
    adv_h = jnp.maximum(adv_h + ba1_ref[...], 0.0)

    # Value head hidden: (tb, 256) @ (256, 128) -> ReLU.
    val_h = jnp.dot(feat, wv1_ref[...], preferred_element_type=jnp.float32)
    val_h = jnp.maximum(val_h + bv1_ref[...], 0.0)

    # Advantage output, lane-padded to 128 columns; padded columns are exactly
    # zero (zero weight columns + zero bias), so they don't perturb the sum.
    adv = jnp.dot(adv_h, wa2_ref[...], preferred_element_type=jnp.float32)
    adv = adv + ba2_ref[...]

    # Mean over the *real* action columns only (static divisor).
    adv_mean = jnp.sum(adv, axis=-1, keepdims=True) * (1.0 / n_actions)

    # Value output: scalar per row -> VPU multiply + row reduce (avoids a
    # lane-sparse (.., 1)-wide MXU matmul).
    val = jnp.sum(val_h * wv2_ref[...], axis=-1, keepdims=True) + bv2_ref[...]

    q_ref[...] = (val + adv - adv_mean).astype(q_ref.dtype)


def dueling_forward(x, params, *, block_b=128):
    """Fused DuelingNet forward. params follow PyTorch (out, in) weight layout."""
    (w1, b1, wa1, ba1, wa2, ba2, wv1, bv1, wv2, bv2) = params
    B, S = x.shape
    H1 = w1.shape[0]       # 256
    H2 = wa1.shape[0]      # 128
    A = wa2.shape[0]       # actions
    A_pad = _round_up(A, 128)

    # One-time wrapper-side transposes / padding (XLA ops, not in the kernel).
    w1_t = w1.T                                                     # (S, H1)
    wa1_t = wa1.T                                                   # (H1, H2)
    wv1_t = wv1.T                                                   # (H1, H2)
    wa2_t = jnp.zeros((H2, A_pad), x.dtype).at[:, :A].set(wa2.T)    # (H2, A_pad)
    ba2_p = jnp.zeros((1, A_pad), x.dtype).at[:, :A].set(ba2)
    wv2_row = wv2.reshape(1, H2)
    bv2_s = bv2.reshape(1, 1)
    b1_r = b1.reshape(1, H1)
    ba1_r = ba1.reshape(1, H2)
    bv1_r = bv1.reshape(1, H2)

    # Batch tiling: sublane-aligned tile, batch zero-padded to whole tiles.
    tb = min(block_b, _round_up(B, 8))
    B_pad = _round_up(B, tb)
    if B_pad != B:
        x = jnp.zeros((B_pad, S), x.dtype).at[:B].set(x)

    def const_spec(shape):
        # Same block every grid step -> weights stay resident in VMEM.
        return pl.BlockSpec(shape, lambda i: (0,) * len(shape))

    q_pad = pl.pallas_call(
        functools.partial(dueling_kernel, n_actions=A),
        out_shape=jax.ShapeDtypeStruct((B_pad, A_pad), x.dtype),
        grid=(B_pad // tb,),
        in_specs=[
            pl.BlockSpec((tb, S), lambda i: (i, 0)),   # x batch tile
            const_spec((S, H1)),        # W1^T
            const_spec((1, H1)),        # b1
            const_spec((H1, H2)),       # Wa1^T
            const_spec((1, H2)),        # ba1
            const_spec((H2, A_pad)),    # Wa2^T (lane-padded)
            const_spec((1, A_pad)),     # ba2   (lane-padded)
            const_spec((H1, H2)),       # Wv1^T
            const_spec((1, H2)),        # bv1
            const_spec((1, H2)),        # Wv2 row
            const_spec((1, 1)),         # bv2
        ],
        out_specs=pl.BlockSpec((tb, A_pad), lambda i: (i, 0)),
        compiler_params=pltpu.CompilerParams(
            dimension_semantics=("parallel",)),
    )(x, w1_t, b1_r, wa1_t, ba1_r, wa2_t, ba2_p, wv1_t, bv1_r, wv2_row, bv2_s)

    return q_pad[:B, :A]


def init_linear(key, fan_in, fan_out):
    """PyTorch nn.Linear default init (uniform +-1/sqrt(fan_in))."""
    kw, kb = jax.random.split(key)
    bound = 1.0 / math.sqrt(fan_in)
    w = jax.random.uniform(kw, (fan_out, fan_in), jnp.float32, -bound, bound)
    b = jax.random.uniform(kb, (fan_out,), jnp.float32, -bound, bound)
    return w, b


if __name__ == "__main__":
    key = jax.random.PRNGKey(0)
    k_x, k1, k2, k3, k4, k5 = jax.random.split(key, 6)

    batch, states, actions = 8, 16, 4
    x = jax.random.normal(k_x, (batch, states), dtype=jnp.float32)

    w1, b1 = init_linear(k1, states, 256)     # feature layer
    wa1, ba1 = init_linear(k2, 256, 128)      # advantage hidden
    wa2, ba2 = init_linear(k3, 128, actions)  # advantage out
    wv1, bv1 = init_linear(k4, 256, 128)      # value hidden
    wv2, bv2 = init_linear(k5, 128, 1)        # value out

    params = (w1, b1, wa1, ba1, wa2, ba2, wv1, bv1, wv2, bv2)

    q = dueling_forward(x, params)
    q = jax.block_until_ready(q)

    # Pure-JAX reference (matches the PyTorch forward).
    feat = jnp.maximum(x @ w1.T + b1, 0.0)
    adv = jnp.maximum(feat @ wa1.T + ba1, 0.0) @ wa2.T + ba2
    val = jnp.maximum(feat @ wv1.T + bv1, 0.0) @ wv2.T + bv2
    q_ref = val + adv - adv.mean(axis=-1, keepdims=True)

    assert q.shape == (batch, actions)
    assert jnp.allclose(q, q_ref, atol=1e-4, rtol=1e-4), float(
        jnp.max(jnp.abs(q - q_ref)))

    print("KERNEL_OK")
</pallas_src>

<mosaic_0001>
module attributes {stable_mosaic.version = 11 : i64} {
  func.func @dueling_kernel(%arg0: i32, %arg1: memref<8x16xf32, #tpu.memory_space<vmem>>, %arg2: memref<16x256xf32, #tpu.memory_space<vmem>>, %arg3: memref<1x256xf32, #tpu.memory_space<vmem>>, %arg4: memref<256x128xf32, #tpu.memory_space<vmem>>, %arg5: memref<1x128xf32, #tpu.memory_space<vmem>>, %arg6: memref<128x128xf32, #tpu.memory_space<vmem>>, %arg7: memref<1x128xf32, #tpu.memory_space<vmem>>, %arg8: memref<256x128xf32, #tpu.memory_space<vmem>>, %arg9: memref<1x128xf32, #tpu.memory_space<vmem>>, %arg10: memref<1x128xf32, #tpu.memory_space<vmem>>, %arg11: memref<1x1xf32, #tpu.memory_space<vmem>>, %arg12: memref<8x128xf32, #tpu.memory_space<vmem>>) attributes {dimension_semantics = [#tpu.dimension_semantics<parallel>], iteration_bounds = array<i64: 1>, scalar_prefetch = 0 : i64, scratch_operands = 0 : i64, tpu.core_type = #tpu.core_type<tc>, window_params = [{transform_indices = @transform_0, window_bounds = array<i64: 8, 16>}, {pipeline_mode = #tpu.pipeline_mode<synchronous>, transform_indices = @transform_1, window_bounds = array<i64: 16, 256>}, {pipeline_mode = #tpu.pipeline_mode<synchronous>, transform_indices = @transform_2, window_bounds = array<i64: 1, 256>}, {pipeline_mode = #tpu.pipeline_mode<synchronous>, transform_indices = @transform_3, window_bounds = array<i64: 256, 128>}, {pipeline_mode = #tpu.pipeline_mode<synchronous>, transform_indices = @transform_4, window_bounds = array<i64: 1, 128>}, {pipeline_mode = #tpu.pipeline_mode<synchronous>, transform_indices = @transform_5, window_bounds = array<i64: 128, 128>}, {pipeline_mode = #tpu.pipeline_mode<synchronous>, transform_indices = @transform_6, window_bounds = array<i64: 1, 128>}, {pipeline_mode = #tpu.pipeline_mode<synchronous>, transform_indices = @transform_7, window_bounds = array<i64: 256, 128>}, {pipeline_mode = #tpu.pipeline_mode<synchronous>, transform_indices = @transform_8, window_bounds = array<i64: 1, 128>}, {pipeline_mode = #tpu.pipeline_mode<synchronous>, transform_indices = @transform_9, window_bounds = array<i64: 1, 128>}, {pipeline_mode = #tpu.pipeline_mode<synchronous>, transform_indices = @transform_10, window_bounds = array<i64: 1, 1>}, {transform_indices = @transform_11, window_bounds = array<i64: 8, 128>}]} {
    %c0 = arith.constant 0 : index
    %c0_0 = arith.constant 0 : index
    %0 = vector.load %arg1[%c0, %c0_0] : memref<8x16xf32, #tpu.memory_space<vmem>>, vector<8x16xf32>
    %c0_1 = arith.constant 0 : index
    %c0_2 = arith.constant 0 : index
    %1 = vector.load %arg2[%c0_1, %c0_2] : memref<16x256xf32, #tpu.memory_space<vmem>>, vector<16x256xf32>
    %cst = arith.constant dense<0.000000e+00> : vector<8x256xf32>
    %2 = tpu.matmul %0, %1, %cst {dimension_numbers = #tpu.dot_dimension_numbers<[1], [0], [0], [1], [0, 0, 1, 1], [], []>} : vector<8x16xf32>, vector<16x256xf32>, vector<8x256xf32> -> vector<8x256xf32>
    %c0_3 = arith.constant 0 : index
    %c0_4 = arith.constant 0 : index
    %3 = vector.load %arg3[%c0_3, %c0_4] : memref<1x256xf32, #tpu.memory_space<vmem>>, vector<1x256xf32>
    %4 = vector.broadcast %3 : vector<1x256xf32> to vector<8x256xf32>
    %5 = arith.addf %2, %4 : vector<8x256xf32>
    %cst_5 = arith.constant 0.000000e+00 : f32
    %6 = vector.broadcast %cst_5 : f32 to vector<8x256xf32>
    %7 = arith.maximumf %5, %6 : vector<8x256xf32>
    %c0_6 = arith.constant 0 : index
    %c0_7 = arith.constant 0 : index
    %8 = vector.load %arg4[%c0_6, %c0_7] : memref<256x128xf32, #tpu.memory_space<vmem>>, vector<256x128xf32>
    %cst_8 = arith.constant dense<0.000000e+00> : vector<8x128xf32>
    %9 = tpu.matmul %7, %8, %cst_8 {dimension_numbers = #tpu.dot_dimension_numbers<[1], [0], [0], [1], [0, 0, 1, 1], [], []>} : vector<8x256xf32>, vector<256x128xf32>, vector<8x128xf32> -> vector<8x128xf32>
    %c0_9 = arith.constant 0 : index
    %c0_10 = arith.constant 0 : index
    %10 = vector.load %arg5[%c0_9, %c0_10] : memref<1x128xf32, #tpu.memory_space<vmem>>, vector<1x128xf32>
    %11 = vector.broadcast %10 : vector<1x128xf32> to vector<8x128xf32>
    %12 = arith.addf %9, %11 : vector<8x128xf32>
    %cst_11 = arith.constant 0.000000e+00 : f32
    %13 = vector.broadcast %cst_11 : f32 to vector<8x128xf32>
    %14 = arith.maximumf %12, %13 : vector<8x128xf32>
    %c0_12 = arith.constant 0 : index
    %c0_13 = arith.constant 0 : index
    %15 = vector.load %arg8[%c0_12, %c0_13] : memref<256x128xf32, #tpu.memory_space<vmem>>, vector<256x128xf32>
    %cst_14 = arith.constant dense<0.000000e+00> : vector<8x128xf32>
    %16 = tpu.matmul %7, %15, %cst_14 {dimension_numbers = #tpu.dot_dimension_numbers<[1], [0], [0], [1], [0, 0, 1, 1], [], []>} : vector<8x256xf32>, vector<256x128xf32>, vector<8x128xf32> -> vector<8x128xf32>
    %c0_15 = arith.constant 0 : index
    %c0_16 = arith.constant 0 : index
    %17 = vector.load %arg9[%c0_15, %c0_16] : memref<1x128xf32, #tpu.memory_space<vmem>>, vector<1x128xf32>
    %18 = vector.broadcast %17 : vector<1x128xf32> to vector<8x128xf32>
    %19 = arith.addf %16, %18 : vector<8x128xf32>
    %cst_17 = arith.constant 0.000000e+00 : f32
    %20 = vector.broadcast %cst_17 : f32 to vector<8x128xf32>
    %21 = arith.maximumf %19, %20 : vector<8x128xf32>
    %c0_18 = arith.constant 0 : index
    %c0_19 = arith.constant 0 : index
    %22 = vector.load %arg6[%c0_18, %c0_19] : memref<128x128xf32, #tpu.memory_space<vmem>>, vector<128x128xf32>
    %cst_20 = arith.constant dense<0.000000e+00> : vector<8x128xf32>
    %23 = tpu.matmul %14, %22, %cst_20 {dimension_numbers = #tpu.dot_dimension_numbers<[1], [0], [0], [1], [0, 0, 1, 1], [], []>} : vector<8x128xf32>, vector<128x128xf32>, vector<8x128xf32> -> vector<8x128xf32>
    %c0_21 = arith.constant 0 : index
    %c0_22 = arith.constant 0 : index
    %24 = vector.load %arg7[%c0_21, %c0_22] : memref<1x128xf32, #tpu.memory_space<vmem>>, vector<1x128xf32>
    %25 = vector.broadcast %24 : vector<1x128xf32> to vector<8x128xf32>
    %26 = arith.addf %23, %25 : vector<8x128xf32>
    %cst_23 = arith.constant dense<0.000000e+00> : vector<8xf32>
    %27 = vector.multi_reduction <add>, %26, %cst_23 [1] : vector<8x128xf32> to vector<8xf32>
    %28 = vector.shape_cast %27 : vector<8xf32> to vector<8x1xf32>
    %cst_24 = arith.constant 2.500000e-01 : f32
    %29 = vector.broadcast %cst_24 : f32 to vector<8x1xf32>
    %30 = arith.mulf %28, %29 : vector<8x1xf32>
    %c0_25 = arith.constant 0 : index
    %c0_26 = arith.constant 0 : index
    %31 = vector.load %arg10[%c0_25, %c0_26] : memref<1x128xf32, #tpu.memory_space<vmem>>, vector<1x128xf32>
    %32 = vector.broadcast %31 : vector<1x128xf32> to vector<8x128xf32>
    %33 = arith.mulf %21, %32 : vector<8x128xf32>
    %cst_27 = arith.constant dense<0.000000e+00> : vector<8xf32>
    %34 = vector.multi_reduction <add>, %33, %cst_27 [1] : vector<8x128xf32> to vector<8xf32>
    %35 = vector.shape_cast %34 : vector<8xf32> to vector<8x1xf32>
    %c0_28 = arith.constant 0 : index
    %c0_29 = arith.constant 0 : index
    %36 = vector.load %arg11[%c0_28, %c0_29] : memref<1x1xf32, #tpu.memory_space<vmem>>, vector<1x1xf32>
    %37 = vector.broadcast %36 : vector<1x1xf32> to vector<8x1xf32>
    %38 = arith.addf %35, %37 : vector<8x1xf32>
    %39 = vector.broadcast %38 : vector<8x1xf32> to vector<8x128xf32>
    %40 = arith.addf %39, %26 : vector<8x128xf32>
    %41 = vector.broadcast %30 : vector<8x1xf32> to vector<8x128xf32>
    %42 = arith.subf %40, %41 : vector<8x128xf32>
    %c0_30 = arith.constant 0 : index
    %c0_31 = arith.constant 0 : index
    %43 = vector.load %arg12[%c0_30, %c0_31] : memref<8x128xf32, #tpu.memory_space<vmem>>, vector<8x128xf32>
    tpu.vector_store %arg12[%c0_30, %c0_31], %42 {strides = array<i32>} : memref<8x128xf32, #tpu.memory_space<vmem>>, vector<8x128xf32>,
    return
  }
  func.func @transform_0(%arg0: i32) -> (i32, i32) {
    %c0_i32 = arith.constant 0 : i32
    %c0_i32_0 = arith.constant 0 : i32
    return %arg0, %c0_i32 : i32, i32
  }
  func.func @transform_1(%arg0: i32) -> (i32, i32) {
    %c0_i32 = arith.constant 0 : i32
    %c0_i32_0 = arith.constant 0 : i32
    %c0_i32_1 = arith.constant 0 : i32
    return %c0_i32, %c0_i32_0 : i32, i32
  }
  func.func @transform_2(%arg0: i32) -> (i32, i32) {
    %c0_i32 = arith.constant 0 : i32
    %c0_i32_0 = arith.constant 0 : i32
    %c0_i32_1 = arith.constant 0 : i32
    return %c0_i32, %c0_i32_0 : i32, i32
  }
  func.func @transform_3(%arg0: i32) -> (i32, i32) {
    %c0_i32 = arith.constant 0 : i32
    %c0_i32_0 = arith.constant 0 : i32
    %c0_i32_1 = arith.constant 0 : i32
    return %c0_i32, %c0_i32_0 : i32, i32
  }
  func.func @transform_4(%arg0: i32) -> (i32, i32) {
    %c0_i32 = arith.constant 0 : i32
    %c0_i32_0 = arith.constant 0 : i32
    %c0_i32_1 = arith.constant 0 : i32
    return %c0_i32, %c0_i32_0 : i32, i32
  }
  func.func @transform_5(%arg0: i32) -> (i32, i32) {
    %c0_i32 = arith.constant 0 : i32
    %c0_i32_0 = arith.constant 0 : i32
    %c0_i32_1 = arith.constant 0 : i32
    return %c0_i32, %c0_i32_0 : i32, i32
  }
  func.func @transform_6(%arg0: i32) -> (i32, i32) {
    %c0_i32 = arith.constant 0 : i32
    %c0_i32_0 = arith.constant 0 : i32
    %c0_i32_1 = arith.constant 0 : i32
    return %c0_i32, %c0_i32_0 : i32, i32
  }
  func.func @transform_7(%arg0: i32) -> (i32, i32) {
    %c0_i32 = arith.constant 0 : i32
    %c0_i32_0 = arith.constant 0 : i32
    %c0_i32_1 = arith.constant 0 : i32
    return %c0_i32, %c0_i32_0 : i32, i32
  }
  func.func @transform_8(%arg0: i32) -> (i32, i32) {
    %c0_i32 = arith.constant 0 : i32
    %c0_i32_0 = arith.constant 0 : i32
    %c0_i32_1 = arith.constant 0 : i32
    return %c0_i32, %c0_i32_0 : i32, i32
  }
  func.func @transform_9(%arg0: i32) -> (i32, i32) {
    %c0_i32 = arith.constant 0 : i32
    %c0_i32_0 = arith.constant 0 : i32
    %c0_i32_1 = arith.constant 0 : i32
    return %c0_i32, %c0_i32_0 : i32, i32
  }
  func.func @transform_10(%arg0: i32) -> (i32, i32) {
    %c0_i32 = arith.constant 0 : i32
    %c0_i32_0 = arith.constant 0 : i32
    %c0_i32_1 = arith.constant 0 : i32
    return %c0_i32, %c0_i32_0 : i32, i32
  }
  func.func @transform_11(%arg0: i32) -> (i32, i32) {
    %c0_i32 = arith.constant 0 : i32
    %c0_i32_0 = arith.constant 0 : i32
    return %arg0, %c0_i32 : i32, i32
  }
}

</mosaic_0001>

<llo_original>
// kernel: tpu_custom_call.1
$region0: #{tpu_custom_call.1}
  #allocation0 [shape = 'u32[]', space=smem, size = 0x4, offset = 0x4, fixed_abs, tag = 'smem constant byte address 0x4 - core index']
  #allocation1 [shape = 'u32[144,128]{1,0:T(1,128)}', space=vmem, size = 0x12000, scoped, tag = 'internal scratch']
  #allocation2 [shape = 'f32[1,1]{1,0:T(1,128)S(1)}', space=vmem, size = 0x200, scoped, tag = 'scoped memory for tpu_custom_call.1']
  %s0 = inlined_call_operand.hbm [shape: f32[8,16], index: 0, kind: input, shape index: {}]
  %s1 = inlined_call_operand.hbm [shape: f32[16,256], index: 1, kind: input, shape index: {}]
  %s2 = inlined_call_operand.vmem [shape: f32[1,256], index: 2, kind: input, shape index: {}]
  %s3 = inlined_call_operand.hbm [shape: f32[256,128], index: 3, kind: input, shape index: {}]
  %s4 = inlined_call_operand.vmem [shape: f32[1,128], index: 4, kind: input, shape index: {}]
  %s5 = inlined_call_operand.hbm [shape: f32[128,128], index: 5, kind: input, shape index: {}]
  %s6 = inlined_call_operand.vmem [shape: f32[1,128], index: 6, kind: input, shape index: {}]
  %s7 = inlined_call_operand.hbm [shape: f32[256,128], index: 7, kind: input, shape index: {}]
  %s8 = inlined_call_operand.vmem [shape: f32[1,128], index: 8, kind: input, shape index: {}]
  %s9 = inlined_call_operand.vmem [shape: f32[1,128], index: 9, kind: input, shape index: {}]
  %s10 = inlined_call_operand.<no memory space> [shape: f32[1,1], index: 10, kind: input, shape index: {}]
  %s11 = inlined_call_operand.hbm [shape: f32[8,128], index: 11, kind: output, shape index: {}]
  %s12 = sld [smem:[#allocation0]]
  $region74: #{tpu_custom_call.1} parent=0
    _
  %s14 = ssub.s32 1, %s12
  %s15 = scalar_select 0, %s14, %s12
  %v16 = vstv %s10
  %17 = vst [vmem:[#allocation2] sm:$0x1] %v16
  $region1: #{tpu_custom_call.1} parent=0
    #allocation3 [shape = 'u8[4096]{0}', space=vmem, size = 0x1000, scoped, tag = 'input window, operand 0, single buffered']
    #allocation4 [shape = 's32[1]{0}', space=sflag, size = 0x4, scoped, tag = 'scoped memory for tpu_custom_call.1']
    #allocation5 [shape = 's32[1]{0}', space=sflag, size = 0x4, scoped, tag = 'scoped memory for tpu_custom_call.1']
    #allocation6 [shape = 'u8[16384]{0}', space=vmem, size = 0x4000, scoped, tag = 'input window, operand 1, single buffered']
    #allocation7 [shape = 's32[1]{0}', space=sflag, size = 0x4, scoped, tag = 'scoped memory for tpu_custom_call.1']
    #allocation8 [shape = 'u8[131072]{0}', space=vmem, size = 0x20000, scoped, tag = 'input window, operand 3, single buffered']
    #allocation9 [shape = 'u8[65536]{0}', space=vmem, size = 0x10000, scoped, tag = 'input window, operand 5, single buffered']
    #allocation10 [shape = 's32[1]{0}', space=sflag, size = 0x4, scoped, tag = 'scoped memory for tpu_custom_call.1']
    #allocation11 [shape = 'u8[131072]{0}', space=vmem, size = 0x20000, scoped, tag = 'input window, operand 7, single buffered']
    #allocation12 [shape = 'u8[4096]{0}', space=vmem, size = 0x1000, scoped, tag = 'output window, operand 0, single buffered']
    %18 = vsyncpa [#allocation4], 0
    %19 = vsyncpa [#allocation7], 0
    %20 = vsyncpa [#allocation10], 0
    %21 = vsyncpa [#allocation5], 0
    // Predicated region
    $region2: #{tpu_custom_call.1} parent=1 // pred_check
      _
    $region3: #{tpu_custom_call.1} parent=1 // pred_check_branch
      %23 = sbr.rel (0) target = $region5
    $region4: #{tpu_custom_call.1} parent=1 // pred_region
      %s25 = ssub.s32 128, 128
      %26 = vsyncadd [#allocation4], %s25
      %s28 = sshll.u32 [#allocation3], 4
      %s29 = int_to_ptr.vmem [resolvable:$true] %s28
      %31 = dma.hbm_to_vmem [thread:$0]  %s0, 128, %s29, [#allocation4]
    $region5: #{tpu_custom_call.1} parent=1 // pred_fallthru
      _
    // Predicated region
    $region6: #{tpu_custom_call.1} parent=1 // pred_check
      _
    $region7: #{tpu_custom_call.1} parent=1 // pred_check_branch
      %33 = sbr.rel (0) target = $region9
    $region8: #{tpu_custom_call.1} parent=1 // pred_region
      %s35 = ssub.s32 512, 512
      %36 = vsyncadd [#allocation7], %s35
      %s37 = sshll.u32 [#allocation6], 4
      %s38 = int_to_ptr.vmem [resolvable:$true] %s37
      %43 = dma.hbm_to_vmem [thread:$0]  %s1, 512, %s38, [#allocation7], 256, 256, 16
    $region9: #{tpu_custom_call.1} parent=1 // pred_fallthru
      _
    // Predicated region
    $region10: #{tpu_custom_call.1} parent=1 // pred_check
      _
    $region11: #{tpu_custom_call.1} parent=1 // pred_check_branch
      %45 = sbr.rel (0) target = $region13
    $region12: #{tpu_custom_call.1} parent=1 // pred_region
      _
    $region13: #{tpu_custom_call.1} parent=1 // pred_fallthru
      _
    // Predicated region
    $region14: #{tpu_custom_call.1} parent=1 // pred_check
      _
    $region15: #{tpu_custom_call.1} parent=1 // pred_check_branch
      %47 = sbr.rel (0) target = $region17
    $region16: #{tpu_custom_call.1} parent=1 // pred_region
      %s49 = ssub.s32 4096, 4096
      %50 = vsyncadd [#allocation7], %s49
      %s51 = sshll.u32 [#allocation8], 4
      %s52 = int_to_ptr.vmem [resolvable:$true] %s51
      %57 = dma.hbm_to_vmem [thread:$0]  %s3, 4096, %s52, [#allocation7], 128, 128, 8
    $region17: #{tpu_custom_call.1} parent=1 // pred_fallthru
      _
    // Predicated region
    $region18: #{tpu_custom_call.1} parent=1 // pred_check
      _
    $region19: #{tpu_custom_call.1} parent=1 // pred_check_branch
      %59 = sbr.rel (0) target = $region21
    $region20: #{tpu_custom_call.1} parent=1 // pred_region
      _
    $region21: #{tpu_custom_call.1} parent=1 // pred_fallthru
      _
    // Predicated region
    $region22: #{tpu_custom_call.1} parent=1 // pred_check
      _
    $region23: #{tpu_custom_call.1} parent=1 // pred_check_branch
      %61 = sbr.rel (0) target = $region25
    $region24: #{tpu_custom_call.1} parent=1 // pred_region
      %s63 = ssub.s32 2048, 2048
      %64 = vsyncadd [#allocation10], %s63
      %s65 = sshll.u32 [#allocation9], 4
      %s66 = int_to_ptr.vmem [resolvable:$true] %s65
      %71 = dma.hbm_to_vmem [thread:$0]  %s5, 2048, %s66, [#allocation10], 128, 128, 8
    $region25: #{tpu_custom_call.1} parent=1 // pred_fallthru
      _
    // Predicated region
    $region26: #{tpu_custom_call.1} parent=1 // pred_check
      _
    $region27: #{tpu_custom_call.1} parent=1 // pred_check_branch
      %73 = sbr.rel (0) target = $region29
    $region28: #{tpu_custom_call.1} parent=1 // pred_region
      _
    $region29: #{tpu_custom_call.1} parent=1 // pred_fallthru
      _
    // Predicated region
    $region30: #{tpu_custom_call.1} parent=1 // pred_check
      _
    $region31: #{tpu_custom_call.1} parent=1 // pred_check_branch
      %75 = sbr.rel (0) target = $region33
    $region32: #{tpu_custom_call.1} parent=1 // pred_region
      %s77 = ssub.s32 4096, 4096
      %78 = vsyncadd [#allocation10], %s77
      %s79 = sshll.u32 [#allocation11], 4
      %s80 = int_to_ptr.vmem [resolvable:$true] %s79
      %85 = dma.hbm_to_vmem [thread:$0]  %s7, 4096, %s80, [#allocation10], 128, 128, 8
    $region33: #{tpu_custom_call.1} parent=1 // pred_fallthru
      _
    // Predicated region
    $region34: #{tpu_custom_call.1} parent=1 // pred_check
      _
    $region35: #{tpu_custom_call.1} parent=1 // pred_check_branch
      %87 = sbr.rel (0) target = $region37
    $region36: #{tpu_custom_call.1} parent=1 // pred_region
      _
    $region37: #{tpu_custom_call.1} parent=1 // pred_fallthru
      _
    // Predicated region
    $region38: #{tpu_custom_call.1} parent=1 // pred_check
      _
    $region39: #{tpu_custom_call.1} parent=1 // pred_check_branch
      %89 = sbr.rel (0) target = $region41
    $region40: #{tpu_custom_call.1} parent=1 // pred_region
      _
    $region41: #{tpu_custom_call.1} parent=1 // pred_fallthru
      _
    // Predicated region
    $region42: #{tpu_custom_call.1} parent=1 // pred_check
      _
    $region43: #{tpu_custom_call.1} parent=1 // pred_check_branch
      %91 = sbr.rel (0) target = $region45
    $region44: #{tpu_custom_call.1} parent=1 // pred_region
      _
    $region45: #{tpu_custom_call.1} parent=1 // pred_fallthru
      _
    // Predicated region
    $region46: #{tpu_custom_call.1} parent=1 // pred_check
      _
    $region47: #{tpu_custom_call.1} parent=1 // pred_check_branch
      %93 = sbr.rel (0) target = $region49
    $region48: #{tpu_custom_call.1} parent=1 // pred_region
      %94 = dma.done [#allocation4], 128
    $region49: #{tpu_custom_call.1} parent=1 // pred_fallthru
      _
    // Predicated region
    $region50: #{tpu_custom_call.1} parent=1 // pred_check
      _
    $region51: #{tpu_custom_call.1} parent=1 // pred_check_branch
      %96 = sbr.rel (0) target = $region53
    $region52: #{tpu_custom_call.1} parent=1 // pred_region
      %97 = dma.done [#allocation7], 512
    $region53: #{tpu_custom_call.1} parent=1 // pred_fallthru
      _
    // Predicated region
    $region54: #{tpu_custom_call.1} parent=1 // pred_check
      _
    $region55: #{tpu_custom_call.1} parent=1 // pred_check_branch
      %99 = sbr.rel (0) target = $region57
    $region56: #{tpu_custom_call.1} parent=1 // pred_region
      %100 = dma.done [#allocation7], 4096
    $region57: #{tpu_custom_call.1} parent=1 // pred_fallthru
      _
    // Predicated region
    $region58: #{tpu_custom_call.1} parent=1 // pred_check
      _
    $region59: #{tpu_custom_call.1} parent=1 // pred_check_branch
      %102 = sbr.rel (0) target = $region61
    $region60: #{tpu_custom_call.1} parent=1 // pred_region
      %103 = dma.done [#allocation10], 2048
    $region61: #{tpu_custom_call.1} parent=1 // pred_fallthru
      _
    // Predicated region
    $region62: #{tpu_custom_call.1} parent=1 // pred_check
      _
    $region63: #{tpu_custom_call.1} parent=1 // pred_check_branch
      %105 = sbr.rel (0) target = $region65
    $region64: #{tpu_custom_call.1} parent=1 // pred_region
      %106 = dma.done [#allocation10], 4096
    $region65: #{tpu_custom_call.1} parent=1 // pred_fallthru
      _
    %v107 = vld [vmem:[#allocation3] sm:$0xff]
    %v108 = vld [vmem:[#allocation6] sm:$0xff]
    %v109 = vld [vmem:[#allocation6 + $0x8] sm:$0xff]
    %v110 = vld [vmem:[#allocation6 + $0x10] sm:$0xff]
    %v111 = vld [vmem:[#allocation6 + $0x18] sm:$0xff]
    %v112 = vld [vmem:[%s2] sm:$0x3]
    %v114 = vlaneseq
    %v115 = vshrl.u32 %v114, 7
    %v116 = vsub.s32 0, %v115
    %v117 = vrot.slane %v112, %v116
    %v118 = vlaneseq
    %v119 = vshrl.u32 %v118, 7
    %v120 = vsub.s32 1, %v119
    %v121 = vrot.slane %v112, %v120
    %vm124 = vcmask 130048
    %v126 = vsel %vm124, %v107, 0
    %128 = vmatprep.subr.mxu0 %v109
    %129 = vmatpush1.msra.mxu0 %v108
    %130 = vmatprep.subr.mxu0 %v111
    %131 = vmatpush1.msra.mxu0 %v110
    %132 = vmatprep.subr.mxu0 0.0
    %133 = vmatpush1.msra.mxu0 0.0
    %134 = vmatprep.subr.mxu0 0.0
    %135 = vmatpush1.msra.mxu0 0.0
    %136 = vmatprep.subr.mxu0 0.0
    %137 = vmatpush1.msra.mxu0 0.0
    %138 = vmatprep.subr.mxu0 0.0
    %139 = vmatpush1.msra.mxu0 0.0
    %140 = vmatprep.subr.mxu0 0.0
    %141 = vmatpush1.msra.mxu0 0.0
    %142 = vmatprep.subr.mxu0 0.0
    %143 = vmatpush1.msra.mxu0 0.0
    %144 = vmatprep.subr.mxu0 0.0
    %145 = vmatpush1.msra.mxu0 0.0
    %146 = vmatprep.subr.mxu0 0.0
    %147 = vmatpush1.msra.mxu0 0.0
    %148 = vmatprep.subr.mxu0 0.0
    %149 = vmatpush1.msra.mxu0 0.0
    %150 = vmatprep.subr.mxu0 0.0
    %151 = vmatpush1.msra.mxu0 0.0
    %152 = vmatprep.subr.mxu0 0.0
    %153 = vmatpush1.msra.mxu0 0.0
    %154 = vmatprep.subr.mxu0 0.0
    %155 = vmatpush1.msra.mxu0 0.0
    %156 = vmatprep.subr.mxu0 0.0
    %157 = vmatpush1.msra.mxu0 0.0
    %158 = vmatprep.subr.mxu0 0.0
    %159 = vmatpush1.msra.mxu0 0.0
    %160 = vmatprep.subr.mxu0 0.0
    %161 = vmatpush1.msra.mxu0 0.0
    %162 = vmatprep.subr.mxu0 0.0
    %163 = vmatpush1.msra.mxu0 0.0
    %164 = vmatprep.subr.mxu0 0.0
    %165 = vmatpush1.msra.mxu0 0.0
    %166 = vmatprep.subr.mxu0 0.0
    %167 = vmatpush1.msra.mxu0 0.0
    %168 = vmatprep.subr.mxu0 0.0
    %169 = vmatpush1.msra.mxu0 0.0
    %170 = vmatprep.subr.mxu0 0.0
    %171 = vmatpush1.msra.mxu0 0.0
    %172 = vmatprep.subr.mxu0 0.0
    %173 = vmatpush1.msra.mxu0 0.0
    %174 = vmatprep.subr.mxu0 0.0
    %175 = vmatpush1.msra.mxu0 0.0
    %176 = vmatprep.subr.mxu0 0.0
    %177 = vmatpush1.msra.mxu0 0.0
    %178 = vmatprep.subr.mxu0 0.0
    %179 = vmatpush1.msra.mxu0 0.0
    %180 = vmatprep.subr.mxu0 0.0
    %181 = vmatpush1.msra.mxu0 0.0
    %182 = vmatprep.subr.mxu0 0.0
    %183 = vmatpush1.msra.mxu0 0.0
    %184 = vmatprep.subr.mxu0 0.0
    %185 = vmatpush1.msra.mxu0 0.0
    %186 = vmatprep.subr.mxu0 0.0
    %187 = vmatpush1.msra.mxu0 0.0
    %188 = vmatprep.subr.mxu0 0.0
    %189 = vmatpush1.msra.mxu0 0.0
    %190 = vmatprep.subr.mxu0 0.0
    %191 = vmatpush1.msra.mxu0 0.0
    %192 = vmatprep.mubr.f32.mxu0 0.0
    %193 = vmatmul.mubr.f32.gmra.mrb[0].mxu0 %v126
    %v194 = vpop.f32.mrb[0].mxu0
    %v195 = vadd.f32 %v117, %v194
    %v196 = vpop.f32.mrb[0].mxu0
    %v197 = vadd.f32 %v121, %v196
    %198 = vdwg.mxu0
    %v199 = vmax.f32 %v195, 0.0
    %v200 = vmax.f32 %v197, 0.0
    %v201 = vld [vmem:[#allocation8] sm:$0xff]
    %v202 = vld [vmem:[#allocation8 + $0x8] sm:$0xff]
    %v203 = vld [vmem:[#allocation8 + $0x10] sm:$0xff]
    %v204 = vld [vmem:[#allocation8 + $0x18] sm:$0xff]
    %v205 = vld [vmem:[#allocation8 + $0x20] sm:$0xff]
    %v206 = vld [vmem:[#allocation8 + $0x28] sm:$0xff]
    %v207 = vld [vmem:[#allocation8 + $0x30] sm:$0xff]
    %v208 = vld [vmem:[#allocation8 + $0x38] sm:$0xff]
    %v209 = vld [vmem:[#allocation8 + $0x40] sm:$0xff]
    %v210 = vld [vmem:[#allocation8 + $0x48] sm:$0xff]
    %v211 = vld [vmem:[#allocation8 + $0x50] sm:$0xff]
    %v212 = vld [vmem:[#allocation8 + $0x58] sm:$0xff]
    %v213 = vld [vmem:[#allocation8 + $0x60] sm:$0xff]
    %v214 = vld [vmem:[#allocation8 + $0x68] sm:$0xff]
    %v215 = vld [vmem:[#allocation8 + $0x70] sm:$0xff]
    %v216 = vld [vmem:[#allocation8 + $0x78] sm:$0xff]
    %v217 = vld [vmem:[#allocation8 + $0x80] sm:$0xff]
    %v218 = vld [vmem:[#allocation8 + $0x88] sm:$0xff]
    %v219 = vld [vmem:[#allocation8 + $0x90] sm:$0xff]
    %v220 = vld [vmem:[#allocation8 + $0x98] sm:$0xff]
    %v221 = vld [vmem:[#allocation8 + $0xa0] sm:$0xff]
    %v222 = vld [vmem:[#allocation8 + $0xa8] sm:$0xff]
    %v223 = vld [vmem:[#allocation8 + $0xb0] sm:$0xff]
    %v224 = vld [vmem:[#allocation8 + $0xb8] sm:$0xff]
    %v225 = vld [vmem:[#allocation8 + $0xc0] sm:$0xff]
    %v226 = vld [vmem:[#allocation8 + $0xc8] sm:$0xff]
    %v227 = vld [vmem:[#allocation8 + $0xd0] sm:$0xff]
    %v228 = vld [vmem:[#allocation8 + $0xd8] sm:$0xff]
    %v229 = vld [vmem:[#allocation8 + $0xe0] sm:$0xff]
    %v230 = vld [vmem:[#allocation8 + $0xe8] sm:$0xff]
    %v231 = vld [vmem:[#allocation8 + $0xf0] sm:$0xff]
    %v232 = vld [vmem:[#allocation8 + $0xf8] sm:$0xff]
    %v233 = vld [vmem:[%s4] sm:$0x1]
    %v235 = vlaneseq
    %v236 = vshrl.u32 %v235, 7
    %v237 = vsub.s32 0, %v236
    %v238 = vrot.slane %v233, %v237
    %240 = vmatprep.subr.mxu0 0.0
    %241 = vmatpush1.msra.mxu0 %v201
    %242 = vmatprep.subr.mxu0 0.0
    %243 = vmatpush1.msra.mxu0 %v202
    %244 = vmatprep.subr.mxu0 0.0
    %245 = vmatpush1.msra.mxu0 %v203
    %246 = vmatprep.subr.mxu0 0.0
    %247 = vmatpush1.msra.mxu0 %v204
    %248 = vmatprep.subr.mxu0 0.0
    %249 = vmatpush1.msra.mxu0 %v205
    %250 = vmatprep.subr.mxu0 0.0
    %251 = vmatpush1.msra.mxu0 %v206
    %252 = vmatprep.subr.mxu0 0.0
    %253 = vmatpush1.msra.mxu0 %v207
    %254 = vmatprep.subr.mxu0 0.0
    %255 = vmatpush1.msra.mxu0 %v208
    %256 = vmatprep.subr.mxu0 0.0
    %257 = vmatpush1.msra.mxu0 %v209
    %258 = vmatprep.subr.mxu0 0.0
    %259 = vmatpush1.msra.mxu0 %v210
    %260 = vmatprep.subr.mxu0 0.0
    %261 = vmatpush1.msra.mxu0 %v211
    %262 = vmatprep.subr.mxu0 0.0
    %263 = vmatpush1.msra.mxu0 %v212
    %264 = vmatprep.subr.mxu0 0.0
    %265 = vmatpush1.msra.mxu0 %v213
    %266 = vmatprep.subr.mxu0 0.0
    %267 = vmatpush1.msra.mxu0 %v214
    %268 = vmatprep.subr.mxu0 0.0
    %269 = vmatpush1.msra.mxu0 %v215
    %270 = vmatprep.subr.mxu0 0.0
    %271 = vmatpush1.msra.mxu0 %v216
    %272 = vmatprep.subr.mxu0 0.0
    %273 = vmatpush1.msra.mxu0 %v217
    %274 = vmatprep.subr.mxu0 0.0
    %275 = vmatpush1.msra.mxu0 %v218
    %276 = vmatprep.subr.mxu0 0.0
    %277 = vmatpush1.msra.mxu0 %v219
    %278 = vmatprep.subr.mxu0 0.0
    %279 = vmatpush1.msra.mxu0 %v220
    %280 = vmatprep.subr.mxu0 0.0
    %281 = vmatpush1.msra.mxu0 %v221
    %282 = vmatprep.subr.mxu0 0.0
    %283 = vmatpush1.msra.mxu0 %v222
    %284 = vmatprep.subr.mxu0 0.0
    %285 = vmatpush1.msra.mxu0 %v223
    %286 = vmatprep.subr.mxu0 0.0
    %287 = vmatpush1.msra.mxu0 %v224
    %288 = vmatprep.subr.mxu0 0.0
    %289 = vmatpush1.msra.mxu0 %v225
    %290 = vmatprep.subr.mxu0 0.0
    %291 = vmatpush1.msra.mxu0 %v226
    %292 = vmatprep.subr.mxu0 0.0
    %293 = vmatpush1.msra.mxu0 %v227
    %294 = vmatprep.subr.mxu0 0.0
    %295 = vmatpush1.msra.mxu0 %v228
    %296 = vmatprep.subr.mxu0 0.0
    %297 = vmatpush1.msra.mxu0 %v229
    %298 = vmatprep.subr.mxu0 0.0
    %299 = vmatpush1.msra.mxu0 %v230
    %300 = vmatprep.subr.mxu0 0.0
    %301 = vmatpush1.msra.mxu0 %v231
    %302 = vmatprep.subr.mxu0 0.0
    %303 = vmatpush1.msra.mxu0 %v232
    %304 = vmatprep.mubr.f32.mxu0 %v200
    %305 = vmatmul.mubr.f32.gmra.mrb[0].mxu0 %v199
    %v306 = vpop.f32.mrb[0].mxu0
    %v307 = vadd.f32 %v238, %v306
    %v308 = vpop.f32.mrb[0].mxu0
    %309 = vdwg.mxu0
    %v310 = vmax.f32 %v307, 0.0
    %v311 = vld [vmem:[#allocation11] sm:$0xff]
    %v312 = vld [vmem:[#allocation11 + $0x8] sm:$0xff]
    %v313 = vld [vmem:[#allocation11 + $0x10] sm:$0xff]
    %v314 = vld [vmem:[#allocation11 + $0x18] sm:$0xff]
    %v315 = vld [vmem:[#allocation11 + $0x20] sm:$0xff]
    %v316 = vld [vmem:[#allocation11 + $0x28] sm:$0xff]
    %v317 = vld [vmem:[#allocation11 + $0x30] sm:$0xff]
    %v318 = vld [vmem:[#allocation11 + $0x38] sm:$0xff]
    %v319 = vld [vmem:[#allocation11 + $0x40] sm:$0xff]
    %v320 = vld [vmem:[#allocation11 + $0x48] sm:$0xff]
    %v321 = vld [vmem:[#allocation11 + $0x50] sm:$0xff]
    %v322 = vld [vmem:[#allocation11 + $0x58] sm:$0xff]
    %v323 = vld [vmem:[#allocation11 + $0x60] sm:$0xff]
    %v324 = vld [vmem:[#allocation11 + $0x68] sm:$0xff]
    %v325 = vld [vmem:[#allocation11 + $0x70] sm:$0xff]
    %v326 = vld [vmem:[#allocation11 + $0x78] sm:$0xff]
    %v327 = vld [vmem:[#allocation11 + $0x80] sm:$0xff]
    %v328 = vld [vmem:[#allocation11 + $0x88] sm:$0xff]
    %v329 = vld [vmem:[#allocation11 + $0x90] sm:$0xff]
    %v330 = vld [vmem:[#allocation11 + $0x98] sm:$0xff]
    %v331 = vld [vmem:[#allocation11 + $0xa0] sm:$0xff]
    %v332 = vld [vmem:[#allocation11 + $0xa8] sm:$0xff]
    %v333 = vld [vmem:[#allocation11 + $0xb0] sm:$0xff]
    %v334 = vld [vmem:[#allocation11 + $0xb8] sm:$0xff]
    %v335 = vld [vmem:[#allocation11 + $0xc0] sm:$0xff]
    %v336 = vld [vmem:[#allocation11 + $0xc8] sm:$0xff]
    %v337 = vld [vmem:[#allocation11 + $0xd0] sm:$0xff]
    %v338 = vld [vmem:[#allocation11 + $0xd8] sm:$0xff]
    %v339 = vld [vmem:[#allocation11 + $0xe0] sm:$0xff]
    %v340 = vld [vmem:[#allocation11 + $0xe8] sm:$0xff]
    %v341 = vld [vmem:[#allocation11 + $0xf0] sm:$0xff]
    %v342 = vld [vmem:[#allocation11 + $0xf8] sm:$0xff]
    %v343 = vld [vmem:[%s8] sm:$0x1]
    %v345 = vlaneseq
    %v346 = vshrl.u32 %v345, 7
    %v347 = vsub.s32 0, %v346
    %v348 = vrot.slane %v343, %v347
    %350 = vmatprep.subr.mxu0 0.0
    %351 = vmatpush1.msra.mxu0 %v311
    %352 = vmatprep.subr.mxu0 0.0
    %353 = vmatpush1.msra.mxu0 %v312
    %354 = vmatprep.subr.mxu0 0.0
    %355 = vmatpush1.msra.mxu0 %v313
    %356 = vmatprep.subr.mxu0 0.0
    %357 = vmatpush1.msra.mxu0 %v314
    %358 = vmatprep.subr.mxu0 0.0
    %359 = vmatpush1.msra.mxu0 %v315
    %360 = vmatprep.subr.mxu0 0.0
    %361 = vmatpush1.msra.mxu0 %v316
    %362 = vmatprep.subr.mxu0 0.0
    %363 = vmatpush1.msra.mxu0 %v317
    %364 = vmatprep.subr.mxu0 0.0
    %365 = vmatpush1.msra.mxu0 %v318
    %366 = vmatprep.subr.mxu0 0.0
    %367 = vmatpush1.msra.mxu0 %v319
    %368 = vmatprep.subr.mxu0 0.0
    %369 = vmatpush1.msra.mxu0 %v320
    %370 = vmatprep.subr.mxu0 0.0
    %371 = vmatpush1.msra.mxu0 %v321
    %372 = vmatprep.subr.mxu0 0.0
    %373 = vmatpush1.msra.mxu0 %v322
    %374 = vmatprep.subr.mxu0 0.0
    %375 = vmatpush1.msra.mxu0 %v323
    %376 = vmatprep.subr.mxu0 0.0
    %377 = vmatpush1.msra.mxu0 %v324
    %378 = vmatprep.subr.mxu0 0.0
    %379 = vmatpush1.msra.mxu0 %v325
    %380 = vmatprep.subr.mxu0 0.0
    %381 = vmatpush1.msra.mxu0 %v326
    %382 = vmatprep.subr.mxu0 0.0
    %383 = vmatpush1.msra.mxu0 %v327
    %384 = vmatprep.subr.mxu0 0.0
    %385 = vmatpush1.msra.mxu0 %v328
    %386 = vmatprep.subr.mxu0 0.0
    %387 = vmatpush1.msra.mxu0 %v329
    %388 = vmatprep.subr.mxu0 0.0
    %389 = vmatpush1.msra.mxu0 %v330
    %390 = vmatprep.subr.mxu0 0.0
    %391 = vmatpush1.msra.mxu0 %v331
    %392 = vmatprep.subr.mxu0 0.0
    %393 = vmatpush1.msra.mxu0 %v332
    %394 = vmatprep.subr.mxu0 0.0
    %395 = vmatpush1.msra.mxu0 %v333
    %396 = vmatprep.subr.mxu0 0.0
    %397 = vmatpush1.msra.mxu0 %v334
    %398 = vmatprep.subr.mxu0 0.0
    %399 = vmatpush1.msra.mxu0 %v335
    %400 = vmatprep.subr.mxu0 0.0
    %401 = vmatpush1.msra.mxu0 %v336
    %402 = vmatprep.subr.mxu0 0.0
    %403 = vmatpush1.msra.mxu0 %v337
    %404 = vmatprep.subr.mxu0 0.0
    %405 = vmatpush1.msra.mxu0 %v338
    %406 = vmatprep.subr.mxu0 0.0
    %407 = vmatpush1.msra.mxu0 %v339
    %408 = vmatprep.subr.mxu0 0.0
    %409 = vmatpush1.msra.mxu0 %v340
    %410 = vmatprep.subr.mxu0 0.0
    %411 = vmatpush1.msra.mxu0 %v341
    %412 = vmatprep.subr.mxu0 0.0
    %413 = vmatpush1.msra.mxu0 %v342
    %414 = vmatprep.mubr.f32.mxu0 %v200
    %415 = vmatmul.mubr.f32.gmra.mrb[0].mxu0 %v199
    %v416 = vpop.f32.mrb[0].mxu0
    %v417 = vadd.f32 %v348, %v416
    %v418 = vpop.f32.mrb[0].mxu0
    %419 = vdwg.mxu0
    %v420 = vmax.f32 %v417, 0.0
    %v421 = vld [vmem:[#allocation9] sm:$0xff]
    %v422 = vld [vmem:[#allocation9 + $0x8] sm:$0xff]
    %v423 = vld [vmem:[#allocation9 + $0x10] sm:$0xff]
    %v424 = vld [vmem:[#allocation9 + $0x18] sm:$0xff]
    %v425 = vld [vmem:[#allocation9 + $0x20] sm:$0xff]
    %v426 = vld [vmem:[#allocation9 + $0x28] sm:$0xff]
    %v427 = vld [vmem:[#allocation9 + $0x30] sm:$0xff]
    %v428 = vld [vmem:[#allocation9 + $0x38] sm:$0xff]
    %v429 = vld [vmem:[#allocation9 + $0x40] sm:$0xff]
    %v430 = vld [vmem:[#allocation9 + $0x48] sm:$0xff]
    %v431 = vld [vmem:[#allocation9 + $0x50] sm:$0xff]
    %v432 = vld [vmem:[#allocation9 + $0x58] sm:$0xff]
    %v433 = vld [vmem:[#allocation9 + $0x60] sm:$0xff]
    %v434 = vld [vmem:[#allocation9 + $0x68] sm:$0xff]
    %v435 = vld [vmem:[#allocation9 + $0x70] sm:$0xff]
    %v436 = vld [vmem:[#allocation9 + $0x78] sm:$0xff]
    %v437 = vld [vmem:[%s6] sm:$0x1]
    %v439 = vlaneseq
    %v440 = vshrl.u32 %v439, 7
    %v441 = vsub.s32 0, %v440
    %v442 = vrot.slane %v437, %v441
    %444 = vmatprep.subr.mxu0 0.0
    %445 = vmatpush1.msra.mxu0 %v421
    %446 = vmatprep.subr.mxu0 0.0
    %447 = vmatpush1.msra.mxu0 %v422
    %448 = vmatprep.subr.mxu0 0.0
    %449 = vmatpush1.msra.mxu0 %v423
    %450 = vmatprep.subr.mxu0 0.0
    %451 = vmatpush1.msra.mxu0 %v424
    %452 = vmatprep.subr.mxu0 0.0
    %453 = vmatpush1.msra.mxu0 %v425
    %454 = vmatprep.subr.mxu0 0.0
    %455 = vmatpush1.msra.mxu0 %v426
    %456 = vmatprep.subr.mxu0 0.0
    %457 = vmatpush1.msra.mxu0 %v427
    %458 = vmatprep.subr.mxu0 0.0
    %459 = vmatpush1.msra.mxu0 %v428
    %460 = vmatprep.subr.mxu0 0.0
    %461 = vmatpush1.msra.mxu0 %v429
    %462 = vmatprep.subr.mxu0 0.0
    %463 = vmatpush1.msra.mxu0 %v430
    %464 = vmatprep.subr.mxu0 0.0
    %465 = vmatpush1.msra.mxu0 %v431
    %466 = vmatprep.subr.mxu0 0.0
    %467 = vmatpush1.msra.mxu0 %v432
    %468 = vmatprep.subr.mxu0 0.0
    %469 = vmatpush1.msra.mxu0 %v433
    %470 = vmatprep.subr.mxu0 0.0
    %471 = vmatpush1.msra.mxu0 %v434
    %472 = vmatprep.subr.mxu0 0.0
    %473 = vmatpush1.msra.mxu0 %v435
    %474 = vmatprep.subr.mxu0 0.0
    %475 = vmatpush1.msra.mxu0 %v436
    %476 = vmatprep.subr.mxu0 0.0
    %477 = vmatpush1.msra.mxu0 0.0
    %478 = vmatprep.subr.mxu0 0.0
    %479 = vmatpush1.msra.mxu0 0.0
    %480 = vmatprep.subr.mxu0 0.0
    %481 = vmatpush1.msra.mxu0 0.0
    %482 = vmatprep.subr.mxu0 0.0
    %483 = vmatpush1.msra.mxu0 0.0
    %484 = vmatprep.subr.mxu0 0.0
    %485 = vmatpush1.msra.mxu0 0.0
    %486 = vmatprep.subr.mxu0 0.0
    %487 = vmatpush1.msra.mxu0 0.0
    %488 = vmatprep.subr.mxu0 0.0
    %489 = vmatpush1.msra.mxu0 0.0
    %490 = vmatprep.subr.mxu0 0.0
    %491 = vmatpush1.msra.mxu0 0.0
    %492 = vmatprep.subr.mxu0 0.0
    %493 = vmatpush1.msra.mxu0 0.0
    %494 = vmatprep.subr.mxu0 0.0
    %495 = vmatpush1.msra.mxu0 0.0
    %496 = vmatprep.subr.mxu0 0.0
    %497 = vmatpush1.msra.mxu0 0.0
    %498 = vmatprep.subr.mxu0 0.0
    %499 = vmatpush1.msra.mxu0 0.0
    %500 = vmatprep.subr.mxu0 0.0
    %501 = vmatpush1.msra.mxu0 0.0
    %502 = vmatprep.subr.mxu0 0.0
    %503 = vmatpush1.msra.mxu0 0.0
    %504 = vmatprep.subr.mxu0 0.0
    %505 = vmatpush1.msra.mxu0 0.0
    %506 = vmatprep.subr.mxu0 0.0
    %507 = vmatpush1.msra.mxu0 0.0
    %508 = vmatprep.mubr.f32.mxu0 0.0
    %509 = vmatmul.mubr.f32.gmra.mrb[0].mxu0 %v310
    %v510 = vpop.f32.mrb[0].mxu0
    %v511 = vadd.f32 %v442, %v510
    %v512 = vpop.f32.mrb[0].mxu0
    %513 = vdwg.mxu0
    %514 = vadd.xlane.f32.xlu0 %v511
    %v515 = vpop.xlane.xlu0 %514
    %v516 = vmul.f32 %v515, 0.25
    %v517 = vld [vmem:[%s9] sm:$0x1]
    %v519 = vlaneseq
    %v520 = vshrl.u32 %v519, 7
    %v521 = vsub.s32 0, %v520
    %v522 = vrot.slane %v517, %v521
    %v524 = vmul.f32 %v420, %v522
    %525 = vadd.xlane.f32.xlu0 %v524
    %v526 = vpop.xlane.xlu0 %525
    %v527 = vld [vmem:[#allocation2] sm:$0x1]
    %v529 = vlaneseq
    %v530 = vshrl.u32 %v529, 7
    %v531 = vsub.s32 0, %v530
    %v532 = vrot.slane %v527, %v531
    %v534 = vadd.f32 %v526, %v532
    %536 = vset.pattern.permute.xlu0 0
    %537 = vperm.xlu0 %536, %v534
    %v538 = vpop.permute.xlu0 %537
    %v540 = vadd.f32 %v538, %v511
    %v541 = vsub.f32 %v540, %v516
    %542 = vst [vmem:[#allocation12] sm:$0xff] %v541
    // Predicated region
    $region66: #{tpu_custom_call.1} parent=1 // pred_check
      _
    $region67: #{tpu_custom_call.1} parent=1 // pred_check_branch
      %544 = sbr.rel (0) target = $region69
    $region68: #{tpu_custom_call.1} parent=1 // pred_region
      %s546 = ssub.s32 128, 128
      %547 = vsyncadd [#allocation5], %s546
      %s549 = sshll.u32 [#allocation12], 4
      %s550 = int_to_ptr.vmem [resolvable:$true] %s549
      %552 = dma.vmem_to_hbm [thread:$0]  %s550, 128, %s11, [#allocation5]
    $region69: #{tpu_custom_call.1} parent=1 // pred_fallthru
      _
    // Predicated region
    $region70: #{tpu_custom_call.1} parent=1 // pred_check
      _
    $region71: #{tpu_custom_call.1} parent=1 // pred_check_branch
      %554 = sbr.rel (0) target = $region73
    $region72: #{tpu_custom_call.1} parent=1 // pred_region
      %555 = dma.done [#allocation5], 128
    $region73: #{tpu_custom_call.1} parent=1 // pred_fallthru
      _
    %556 = vsyncpa [#allocation4], 1
    %557 = vsyncpa [#allocation7], 1
    %558 = vsyncpa [#allocation10], 1
    %559 = vsyncpa [#allocation5], 1

</llo_original>
